<compile_context>
chip_gen: v7x
topology: tpu7x:2x2x1
jax: 0.10.0
libtpu: 0.0.40
codegen_flags: <defaults>
</compile_context>

<pallas_src>
import jax
import jax.numpy as jnp
from jax.experimental import pallas as pl
from jax.experimental.pallas import tpu as pltpu

NO = 6  # outputs per anchor (x, y, w, h, obj, cls) -- fixed by the module


def _yolo_kernel(mul_ref, add_ref, p_ref, io_ref):
    # mul_ref: (1, a_chunk, NO, 1)  per-row multiplier (stride | aw | ah | 1)
    # add_ref: (1, 1, NO, S)        per-(chan, spatial) additive term
    # p_ref:   (bs_chunk, a_chunk, NO, S) raw predictions (f32 or bf16)
    # io_ref:  (bs_chunk, a_chunk, NO, S) f32 decoded output
    x = p_ref[...].astype(jnp.float32)
    chan = jax.lax.broadcasted_iota(jnp.int32, x.shape, 2)
    is_wh = jnp.logical_and(chan >= 2, chan <= 3)
    # Single EUP pass: exp(x) for w/h rows, exp(-x) (-> sigmoid) for the rest.
    e = jnp.exp(jnp.where(is_wh, x, -x))
    val = jnp.where(is_wh, e, 1.0 / (1.0 + e))
    io_ref[...] = val * mul_ref[...] + add_ref[...]


def yolo_layer_forward(p, anchors, img_size, *, return_p=True, two_tensorcores=False):
    """Inference forward of YOLOLayer.

    Args:
      p: (bs, na*NO, ny, nx) feature map (NCHW, like the PyTorch module),
         f32 or bf16.
      anchors: (na, 2) anchor sizes in pixels.
      img_size: tuple of ints (max(img_size) is used, like the PyTorch code).
      return_p: also return the permuted raw predictions (module semantics).
                Set False to skip one full lane-sparse HBM round trip.
      two_tensorcores: set True on a 2-TC chip (v7x) so the bs==1 case is
                split over anchors; leave False on single-TC v5e/v6e.

    Returns:
      io: (bs, na*ny*nx, NO) decoded boxes (f32), and (if return_p)
      p_perm: (bs, na, ny, nx, NO) raw permuted predictions.
    """
    bs, ch, ny, nx = p.shape
    anchors = jnp.asarray(anchors, dtype=jnp.float32)
    na = anchors.shape[0]
    assert ch == na * NO, "channel dim must be na * no"

    img = float(max(img_size))
    stride = img / float(max(nx, ny))
    s = ny * nx

    # ---- tiny host-side constant tables ------------------------------------
    # Per-row multiplier: stride (x,y) | anchor_w | anchor_h | 1 (obj, cls).
    # Note anchor_vec * stride == anchors, so raw anchors are used directly.
    row_mul = jnp.concatenate(
        [jnp.full((na, 2), stride, jnp.float32),
         anchors,
         jnp.ones((na, NO - 4), jnp.float32)],
        axis=1).reshape(1, na, NO, 1)

    # Per-(channel, flat-spatial) additive term: gx*stride | gy*stride | 0...
    yv, xv = jnp.meshgrid(jnp.arange(ny, dtype=jnp.float32),
                          jnp.arange(nx, dtype=jnp.float32), indexing="ij")
    grid_add = jnp.concatenate(
        [(xv * stride).reshape(1, 1, 1, s),
         (yv * stride).reshape(1, 1, 1, s),
         jnp.zeros((1, 1, NO - 2, s), jnp.float32)],
        axis=2)  # (1, 1, NO, S)

    p4 = p.reshape(bs, na, NO, s)  # contiguous reshape: free; spatial -> lanes

    # ---- grid / block selection ---------------------------------------------
    in_bytes = jnp.dtype(p.dtype).itemsize
    per_b_bytes = na * NO * s * (in_bytes + 4)  # input block + f32 output block
    bs_chunk = max(1, min(bs, (4 << 20) // max(per_b_bytes, 1)))
    if bs >= 2:
        # Keep >= 2 grid steps so a 2-TC chip (v7x) still gets parallel work.
        bs_chunk = min(bs_chunk, max(1, bs // 2))
    while bs % bs_chunk:
        bs_chunk -= 1

    a_chunk = na
    if bs == 1 and two_tensorcores and na >= 2:
        a_chunk = 1  # v7x only: bs==1 -> split over anchors for the 2nd TC
    n_b, n_a = bs // bs_chunk, na // a_chunk

    io4 = pl.pallas_call(
        _yolo_kernel,
        out_shape=jax.ShapeDtypeStruct((bs, na, NO, s), jnp.float32),
        grid_spec=pltpu.PrefetchScalarGridSpec(
            num_scalar_prefetch=0,
            grid=(n_b, n_a),
            in_specs=[
                pl.BlockSpec((1, a_chunk, NO, 1), lambda b, a: (0, a, 0, 0)),
                pl.BlockSpec((1, 1, NO, s), lambda b, a: (0, 0, 0, 0)),
                # TODO(synk): sweep pipeline_mode=pl.Buffered(3) here on v7x if
                # a trace shows exposed DMA issue latency on these small blocks.
                pl.BlockSpec((bs_chunk, a_chunk, NO, s), lambda b, a: (b, a, 0, 0)),
            ],
            out_specs=pl.BlockSpec((bs_chunk, a_chunk, NO, s),
                                   lambda b, a: (b, a, 0, 0)),
        ),
        compiler_params=pltpu.CompilerParams(
            dimension_semantics=("parallel", "parallel"),
        ),
    )(row_mul, grid_add, p4)

    # Layout glue kept in XLA: permute(0,1,3,4,2) + view(bs, -1, no), as in
    # the PyTorch module.  Skipped for p when return_p=False.
    io = jnp.transpose(io4.reshape(bs, na, NO, ny, nx),
                       (0, 1, 3, 4, 2)).reshape(bs, -1, NO)
    if not return_p:
        return io
    p_perm = jnp.transpose(p.reshape(bs, na, NO, ny, nx), (0, 1, 3, 4, 2))
    return io, p_perm


def _reference(p, anchors, img_size):
    """Pure-JAX reference mirroring the PyTorch eval forward."""
    bs, ch, ny, nx = p.shape
    na = anchors.shape[0]
    img = float(max(img_size))
    stride = img / float(max(nx, ny))
    anchor_wh = (anchors / stride).reshape(1, na, 1, 1, 2)
    yv, xv = jnp.meshgrid(jnp.arange(ny), jnp.arange(nx), indexing="ij")
    grid_xy = jnp.stack([xv, yv], axis=-1).astype(p.dtype).reshape(1, 1, ny, nx, 2)

    pp = jnp.transpose(p.reshape(bs, na, NO, ny, nx), (0, 1, 3, 4, 2))
    xy = (jax.nn.sigmoid(pp[..., :2]) + grid_xy) * stride
    wh = jnp.exp(pp[..., 2:4]) * anchor_wh * stride
    rest = jax.nn.sigmoid(pp[..., 4:])
    io = jnp.concatenate([xy, wh, rest], axis=-1)
    return io.reshape(bs, -1, NO), pp


def _check(bs, ny, nx, anchors, img_size, key, *, dtype=jnp.float32,
           two_tensorcores=False):
    na = anchors.shape[0]
    p = jax.random.normal(key, (bs, na * NO, ny, nx), dtype=jnp.float32).astype(dtype)

    io, p_perm = yolo_layer_forward(p, anchors, img_size,
                                    two_tensorcores=two_tensorcores)
    io = jax.block_until_ready(io)
    p_perm = jax.block_until_ready(p_perm)

    io_ref, pp_ref = _reference(p.astype(jnp.float32), anchors, img_size)
    assert io.shape == (bs, na * ny * nx, NO)
    assert p_perm.shape == (bs, na, ny, nx, NO)
    assert jnp.allclose(io, io_ref, atol=1e-4, rtol=1e-4), \
        float(jnp.max(jnp.abs(io - io_ref)))
    assert jnp.allclose(p_perm.astype(jnp.float32), pp_ref, atol=1e-6, rtol=1e-6)


if __name__ == "__main__":
    key = jax.random.PRNGKey(0)
    k1, k2, k3, k4 = jax.random.split(key, 4)
    anchors = jnp.array([[10.0, 13.0], [16.0, 30.0], [33.0, 23.0]],
                        dtype=jnp.float32)

    # bs >= 2: coarse blocks (one batch element, all anchors, per grid step).
    _check(bs=2, ny=16, nx=16, anchors=anchors, img_size=(128, 128), key=k1)
    # bs == 1: default is one big step (single-TC v5e/v6e); here we exercise
    # the v7x anchor-split path explicitly.
    _check(bs=1, ny=16, nx=16, anchors=anchors, img_size=(128, 128), key=k2,
           two_tensorcores=True)
    # non-square spatial map: checks gx/gy offsets + stride handling.
    _check(bs=2, ny=8, nx=16, anchors=anchors, img_size=(128, 128), key=k3)
    # bf16 activations: kernel upcasts on load, io stays f32.
    _check(bs=2, ny=16, nx=16, anchors=anchors, img_size=(128, 128), key=k4,
           dtype=jnp.bfloat16)

    # return_p=False skips the lane-sparse p_perm transpose pass entirely.
    p_demo = jax.random.normal(k1, (2, 3 * NO, 16, 16), dtype=jnp.float32)
    io_only = jax.block_until_ready(
        yolo_layer_forward(p_demo, anchors, (128, 128), return_p=False))
    assert io_only.shape == (2, 3 * 16 * 16, NO)

    print("KERNEL_OK")
</pallas_src>

<mosaic_0001>
module attributes {stable_mosaic.version = 11 : i64} {
  func.func @_yolo_kernel(%arg0: i32, %arg1: i32, %arg2: memref<1x3x6x1xf32, #tpu.memory_space<vmem>>, %arg3: memref<1x1x6x256xf32, #tpu.memory_space<vmem>>, %arg4: memref<1x3x6x256xf32, #tpu.memory_space<vmem>>, %arg5: memref<1x3x6x256xf32, #tpu.memory_space<vmem>>) attributes {dimension_semantics = [#tpu.dimension_semantics<parallel>, #tpu.dimension_semantics<parallel>], iteration_bounds = array<i64: 2, 1>, scalar_prefetch = 0 : i64, scratch_operands = 0 : i64, tpu.core_type = #tpu.core_type<tc>, window_params = [{transform_indices = @transform_0, window_bounds = array<i64: 1, 3, 6, 1>}, {pipeline_mode = #tpu.pipeline_mode<synchronous>, transform_indices = @transform_1, window_bounds = array<i64: 1, 1, 6, 256>}, {transform_indices = @transform_2, window_bounds = array<i64: 1, 3, 6, 256>}, {transform_indices = @transform_3, window_bounds = array<i64: 1, 3, 6, 256>}]} {
    %c0 = arith.constant 0 : index
    %c0_0 = arith.constant 0 : index
    %c0_1 = arith.constant 0 : index
    %c0_2 = arith.constant 0 : index
    %0 = vector.load %arg4[%c0, %c0_0, %c0_1, %c0_2] : memref<1x3x6x256xf32, #tpu.memory_space<vmem>>, vector<1x3x6x256xf32>
    %1 = tpu.iota {dimensions = array<i32: 2>} : vector<1x3x6x256xi32>
    %c2_i32 = arith.constant 2 : i32
    %2 = vector.broadcast %c2_i32 : i32 to vector<1x3x6x256xi32>
    %3 = arith.cmpi sge, %1, %2 : vector<1x3x6x256xi32>
    %c3_i32 = arith.constant 3 : i32
    %4 = vector.broadcast %c3_i32 : i32 to vector<1x3x6x256xi32>
    %5 = arith.cmpi sle, %1, %4 : vector<1x3x6x256xi32>
    %6 = arith.andi %3, %5 : vector<1x3x6x256xi1>
    %cst = arith.constant 0.000000e+00 : f32
    %7 = vector.broadcast %cst : f32 to vector<1x3x6x256xf32>
    %8 = arith.subf %7, %0 : vector<1x3x6x256xf32>
    %9 = arith.select %6, %0, %8 : vector<1x3x6x256xi1>, vector<1x3x6x256xf32>
    %10 = math.exp %9 : vector<1x3x6x256xf32>
    %cst_3 = arith.constant 1.000000e+00 : f32
    %11 = vector.broadcast %cst_3 : f32 to vector<1x3x6x256xf32>
    %12 = arith.addf %11, %10 : vector<1x3x6x256xf32>
    %cst_4 = arith.constant 1.000000e+00 : f32
    %13 = vector.broadcast %cst_4 : f32 to vector<1x3x6x256xf32>
    %14 = arith.divf %13, %12 : vector<1x3x6x256xf32>
    %15 = arith.select %6, %10, %14 : vector<1x3x6x256xi1>, vector<1x3x6x256xf32>
    %c0_5 = arith.constant 0 : index
    %c0_6 = arith.constant 0 : index
    %c0_7 = arith.constant 0 : index
    %c0_8 = arith.constant 0 : index
    %16 = vector.load %arg2[%c0_5, %c0_6, %c0_7, %c0_8] : memref<1x3x6x1xf32, #tpu.memory_space<vmem>>, vector<1x3x6x1xf32>
    %17 = vector.broadcast %16 : vector<1x3x6x1xf32> to vector<1x3x6x256xf32>
    %18 = arith.mulf %15, %17 : vector<1x3x6x256xf32>
    %c0_9 = arith.constant 0 : index
    %c0_10 = arith.constant 0 : index
    %c0_11 = arith.constant 0 : index
    %c0_12 = arith.constant 0 : index
    %19 = vector.load %arg3[%c0_9, %c0_10, %c0_11, %c0_12] : memref<1x1x6x256xf32, #tpu.memory_space<vmem>>, vector<1x1x6x256xf32>
    %20 = vector.broadcast %19 : vector<1x1x6x256xf32> to vector<1x3x6x256xf32>
    %21 = arith.addf %18, %20 : vector<1x3x6x256xf32>
    %c0_13 = arith.constant 0 : index
    %c0_14 = arith.constant 0 : index
    %c0_15 = arith.constant 0 : index
    %c0_16 = arith.constant 0 : index
    %22 = vector.load %arg5[%c0_13, %c0_14, %c0_15, %c0_16] : memref<1x3x6x256xf32, #tpu.memory_space<vmem>>, vector<1x3x6x256xf32>
    tpu.vector_store %arg5[%c0_13, %c0_14, %c0_15, %c0_16], %21 {strides = array<i32>} : memref<1x3x6x256xf32, #tpu.memory_space<vmem>>, vector<1x3x6x256xf32>,
    return
  }
  func.func @transform_0(%arg0: i32, %arg1: i32) -> (i32, i32, i32, i32) {
    %c0_i32 = arith.constant 0 : i32
    %c0_i32_0 = arith.constant 0 : i32
    %c0_i32_1 = arith.constant 0 : i32
    %c0_i32_2 = arith.constant 0 : i32
    return %c0_i32, %arg1, %c0_i32_0, %c0_i32_1 : i32, i32, i32, i32
  }
  func.func @transform_1(%arg0: i32, %arg1: i32) -> (i32, i32, i32, i32) {
    %c0_i32 = arith.constant 0 : i32
    %c0_i32_0 = arith.constant 0 : i32
    %c0_i32_1 = arith.constant 0 : i32
    %c0_i32_2 = arith.constant 0 : i32
    %c0_i32_3 = arith.constant 0 : i32
    return %c0_i32, %c0_i32_0, %c0_i32_1, %c0_i32_2 : i32, i32, i32, i32
  }
  func.func @transform_2(%arg0: i32, %arg1: i32) -> (i32, i32, i32, i32) {
    %c0_i32 = arith.constant 0 : i32
    %c0_i32_0 = arith.constant 0 : i32
    %c0_i32_1 = arith.constant 0 : i32
    return %arg0, %arg1, %c0_i32, %c0_i32_0 : i32, i32, i32, i32
  }
  func.func @transform_3(%arg0: i32, %arg1: i32) -> (i32, i32, i32, i32) {
    %c0_i32 = arith.constant 0 : i32
    %c0_i32_0 = arith.constant 0 : i32
    %c0_i32_1 = arith.constant 0 : i32
    return %arg0, %arg1, %c0_i32, %c0_i32_0 : i32, i32, i32, i32
  }
}

</mosaic_0001>

<llo_original>
// kernel: tpu_custom_call.1
$region0: #{tpu_custom_call.1}
  #allocation0 [shape = 'u32[]', space=smem, size = 0x4, offset = 0x4, fixed_abs, tag = 'smem constant byte address 0x4 - core index']
  #allocation1 [shape = 'u32[144,128]{1,0:T(1,128)}', space=vmem, size = 0x12000, scoped, tag = 'internal scratch']
  %s0 = inlined_call_operand.vmem [shape: f32[1,3,6,1], index: 0, kind: input, shape index: {}]
  %s1 = inlined_call_operand.vmem [shape: f32[1,1,6,256], index: 1, kind: input, shape index: {}]
  %s2 = inlined_call_operand.vmem [shape: f32[2,3,6,256], index: 2, kind: input, shape index: {}]
  %s3 = inlined_call_operand.vmem [shape: f32[2,3,6,256], index: 3, kind: output, shape index: {}]
  %s4 = sld [smem:[#allocation0]]
  $region45: #{tpu_custom_call.1} parent=0
    _
  %s6 = ssub.s32 1, %s4
  %s7 = scalar_select 0, %s6, %s4
  loop: start=0, step=1, limit=4
  $region2: #{tpu_custom_call.1} parent=0 // loop_pre_header
    _
  $region3: #{tpu_custom_call.1} parent=0 // loop_header
    %s9 = sphi 0, %s13
    %p10 = scmp.ge.s32.totalorder %s9, 4
    %s16 = sphi 0, %s28
    %s17 = sphi 0, %s24
    %s18 = sphi 0, %s16
    %s19 = sphi 0, %s17
    %s20 = sphi 0, %s18
    %s21 = sphi 0, %s19
    %s31 = sphi 0, %s33
    %s34 = sphi 0, %s31
    %s35 = sphi 0, %s34
    %s51 = sphi 0, %s35
    %s55 = sphi 0, %s55
    %s57 = sphi 0, %s55
    %s58 = sphi 0, %s57
    %s72 = sphi 0, %s58
    %s80 = sphi 0, %s82
    %s83 = sphi 0, %s80
    %s84 = sphi 0, %s83
    %s100 = sphi 0, %s84
    %s108 = sphi 0, %s110
    %s111 = sphi 0, %s108
    %s112 = sphi 0, %s111
    %s128 = sphi 0, %s112
  $region4: #{tpu_custom_call.1} parent=0 // loop_header_branch
    %12 = sbr.rel (%p10) target = $region8
  $region5: #{tpu_custom_call.1} parent=0 // loop_body
    %s14 = ssub.s32 %s9, 1
    %s15 = ssub.s32 %s9, 2
    %s22 = sadd.s32 1, %s17
    %p23 = scmp.ge.s32.totalorder %s22, 1
    %s24 = scalar_select %p23, 0, %s22
    %s25 = sadd.s32 1, %s16
    %s26 = scalar_select %p23, %s25, %s16
    %p27 = scmp.ge.s32.totalorder %s26, 2
    %s28 = scalar_select %p27, 0, %s26
    %s29 = ssub.s32 %s17, %s24
    %p30 = scmp.eq.s32.totalorder %s29, 0
    %s32 = sadd.s32 %s31, 1
    %s33 = scalar_select %p30, %s31, %s32
    %p36 = pneg %p30
    %p37 = scmp.eq.s32.totalorder %s9, 1
    %p38 = por %p36, %p37
    %p39 = scmp.ne.s32.totalorder %s31, %s34
    %p40 = scmp.eq.s32.totalorder %s9, 0
    %p41 = por %p39, %p40
    %p42 = scmp.ne.s32.totalorder %s31, %s34
    %p43 = scmp.eq.s32.totalorder %s14, 1
    %p44 = por %p42, %p43
    %p45 = scmp.ne.s32.totalorder %s34, %s35
    %p46 = scmp.eq.s32.totalorder %s14, 0
    %p47 = por %p45, %p46
    %p48 = scmp.ne.s32.totalorder %s34, %s35
    %p49 = scmp.eq.s32.totalorder %s15, 1
    %p50 = por %p48, %p49
    %p52 = scmp.ne.s32.totalorder %s35, %s51
    %p53 = scmp.eq.s32.totalorder %s15, 0
    %p54 = por %p52, %p53
    %s56 = sadd.s32 %s55, 1
    %p59 = scmp.eq.s32.totalorder %s9, 1
    %p60 = scmp.ne.s32.totalorder %s55, %s57
    %p61 = scmp.eq.s32.totalorder %s9, 0
    %p62 = por %p60, %p61
    %p63 = scmp.ne.s32.totalorder %s55, %s57
    %p64 = scmp.eq.s32.totalorder %s14, 1
    %p65 = por %p63, %p64
    %p66 = scmp.ne.s32.totalorder %s57, %s58
    %p67 = scmp.eq.s32.totalorder %s14, 0
    %p68 = por %p66, %p67
    %p69 = scmp.ne.s32.totalorder %s57, %s58
    %p70 = scmp.eq.s32.totalorder %s15, 1
    %p71 = por %p69, %p70
    %p73 = scmp.ne.s32.totalorder %s58, %s72
    %p74 = scmp.eq.s32.totalorder %s15, 0
    %p75 = por %p73, %p74
    %s76 = ssub.s32 %s16, %s28
    %s77 = ssub.s32 %s17, %s24
    %s78 = sor.u32 %s76, %s77
    %p79 = scmp.eq.s32.totalorder %s78, 0
    %s81 = sadd.s32 %s80, 1
    %s82 = scalar_select %p79, %s80, %s81
    %p85 = pneg %p79
    %p86 = scmp.eq.s32.totalorder %s9, 1
    %p87 = por %p85, %p86
    %p88 = scmp.ne.s32.totalorder %s80, %s83
    %p89 = scmp.eq.s32.totalorder %s9, 0
    %p90 = por %p88, %p89
    %p91 = scmp.ne.s32.totalorder %s80, %s83
    %p92 = scmp.eq.s32.totalorder %s14, 1
    %p93 = por %p91, %p92
    %p94 = scmp.ne.s32.totalorder %s83, %s84
    %p95 = scmp.eq.s32.totalorder %s14, 0
    %p96 = por %p94, %p95
    %p97 = scmp.ne.s32.totalorder %s83, %s84
    %p98 = scmp.eq.s32.totalorder %s15, 1
    %p99 = por %p97, %p98
    %p101 = scmp.ne.s32.totalorder %s84, %s100
    %p102 = scmp.eq.s32.totalorder %s15, 0
    %p103 = por %p101, %p102
    %s104 = ssub.s32 %s16, %s28
    %s105 = ssub.s32 %s17, %s24
    %s106 = sor.u32 %s104, %s105
    %p107 = scmp.eq.s32.totalorder %s106, 0
    %s109 = sadd.s32 %s108, 1
    %s110 = scalar_select %p107, %s108, %s109
    %p113 = pneg %p107
    %p114 = scmp.eq.s32.totalorder %s9, 1
    %p115 = por %p113, %p114
    %p116 = scmp.ne.s32.totalorder %s108, %s111
    %p117 = scmp.eq.s32.totalorder %s9, 0
    %p118 = por %p116, %p117
    %p119 = scmp.ne.s32.totalorder %s108, %s111
    %p120 = scmp.eq.s32.totalorder %s14, 1
    %p121 = por %p119, %p120
    %p122 = scmp.ne.s32.totalorder %s111, %s112
    %p123 = scmp.eq.s32.totalorder %s14, 0
    %p124 = por %p122, %p123
    %p125 = scmp.ne.s32.totalorder %s111, %s112
    %p126 = scmp.eq.s32.totalorder %s15, 1
    %p127 = por %p125, %p126
    %p129 = scmp.ne.s32.totalorder %s112, %s128
    %p130 = scmp.eq.s32.totalorder %s15, 0
    %p131 = por %p129, %p130
    %p132 = scmp.le.s32.totalorder 1, %s9
    %p133 = scmp.lt.s32.totalorder %s9, 3
    %p134 = pnand %p132, %p133
    %p135 = pneg %p134
    // Predicated region
    $region9: #{tpu_custom_call.1} parent=5 // pred_check
      _
    $region10: #{tpu_custom_call.1} parent=5 // pred_check_branch
      %137 = sbr.rel (%p134) target = $region12
    $region11: #{tpu_custom_call.1} parent=5 // pred_region
      %s138 = ssub.s32 %s9, 1
      // Predicated region
      $region13: #{tpu_custom_call.1} parent=11 // pred_check
        %p139 = pneg %p47
      $region14: #{tpu_custom_call.1} parent=11 // pred_check_branch
        %141 = sbr.rel (%p139) target = $region16
      $region15: #{tpu_custom_call.1} parent=11 // pred_region
        %s142 = smul.u32 3, %s19
        %p143 = scmp.lt.s32.totalorder %s142, 2
        %s144 = scalar_select %p143, %s142, 2
        %s145 = smul.addr %s144, 8
        %s146 = scalar_lea.vmem %s0, %s145
        %s147 = smul.u32 3, %s19
      $region16: #{tpu_custom_call.1} parent=11 // pred_fallthru
        _
      // Predicated region
      $region17: #{tpu_custom_call.1} parent=11 // pred_check
        %p148 = pneg %p68
      $region18: #{tpu_custom_call.1} parent=11 // pred_check_branch
        %150 = sbr.rel (%p148) target = $region20
      $region19: #{tpu_custom_call.1} parent=11 // pred_region
        _
      $region20: #{tpu_custom_call.1} parent=11 // pred_fallthru
        _
    $region12: #{tpu_custom_call.1} parent=5 // pred_fallthru
      _
    %p151 = scmp.lt.s32.totalorder %s9, 2
    // Predicated region
    $region21: #{tpu_custom_call.1} parent=5 // pred_check
      %p152 = pneg %p151
    $region22: #{tpu_custom_call.1} parent=5 // pred_check_branch
      %154 = sbr.rel (%p152) target = $region24
    $region23: #{tpu_custom_call.1} parent=5 // pred_region
      // Predicated region
      $region25: #{tpu_custom_call.1} parent=23 // pred_check
        %p155 = pneg %p90
      $region26: #{tpu_custom_call.1} parent=23 // pred_check_branch
        %157 = sbr.rel (%p155) target = $region28
      $region27: #{tpu_custom_call.1} parent=23 // pred_region
        %s158 = smul.u32 3, %s17
        %p159 = scmp.lt.s32.totalorder %s16, 1
        %s160 = scalar_select %p159, %s16, 1
        %p161 = scmp.lt.s32.totalorder %s158, 2
        %s162 = scalar_select %p161, %s158, 2
        %s163 = smul.addr %s162, 2
        %s164 = smul.addr %s160, 6
        %s165 = sadd.s32 %s163, %s164
        %s166 = smul.addr %s165, 8
        %s167 = scalar_lea.vmem %s2, %s166
        %s168 = smul.u32 3, %s17
      $region28: #{tpu_custom_call.1} parent=23 // pred_fallthru
        _
    $region24: #{tpu_custom_call.1} parent=5 // pred_fallthru
      _
    %p169 = scmp.le.s32.totalorder 1, %s9
    %p170 = scmp.lt.s32.totalorder %s9, 3
    %p171 = pnand %p169, %p170
    %p172 = pneg %p171
    // Predicated region
    $region29: #{tpu_custom_call.1} parent=5 // pred_check
      _
    $region30: #{tpu_custom_call.1} parent=5 // pred_check_branch
      %174 = sbr.rel (%p171) target = $region32
    $region31: #{tpu_custom_call.1} parent=5 // pred_region
      %s175 = ssub.s32 %s9, 1
      %s176 = smul.u32 3, %s19
      %p177 = scmp.lt.s32.totalorder %s176, 2
      %s178 = scalar_select %p177, %s176, 2
      %s179 = smul.addr %s178, 8
      %s180 = scalar_lea.vmem %s0, %s179
      %p181 = pneg %p47
      %p182 = pneg %p44
      %p183 = pneg %p68
      %p184 = pneg %p65
      %s185 = smul.u32 3, %s19
      %p186 = scmp.lt.s32.totalorder %s18, 1
      %s187 = scalar_select %p186, %s18, 1
      %p188 = scmp.lt.s32.totalorder %s185, 2
      %s189 = scalar_select %p188, %s185, 2
      %s190 = smul.addr %s189, 2
      %s191 = smul.addr %s187, 6
      %s192 = sadd.s32 %s190, %s191
      %s193 = smul.addr %s192, 8
      %s194 = scalar_lea.vmem %s2, %s193
      %p195 = pneg %p96
      %p196 = pneg %p93
      %p197 = pneg %p124
      %p198 = pneg %p121
      %s199 = smul.u32 3, %s19
      %p200 = scmp.lt.s32.totalorder %s18, 1
      %s201 = scalar_select %p200, %s18, 1
      %p202 = scmp.lt.s32.totalorder %s199, 2
      %s203 = scalar_select %p202, %s199, 2
      %s204 = smul.addr %s203, 2
      %s205 = smul.addr %s201, 6
      %s206 = sadd.s32 %s204, %s205
      %s207 = smul.addr %s206, 8
      %s208 = scalar_lea.vmem %s3, %s207
      %s209 = smul.u32 3, %s19
      %p210 = scmp.lt.s32.totalorder %s209, 2
      %s211 = scalar_select %p210, %s209, 2
      %s212 = smul.addr %s211, 8
      %s213 = scalar_lea.vmem %s0, %s212
      %s214 = smul.u32 3, %s19
      %s215 = smul.u32 3, %s19
      %p216 = scmp.lt.s32.totalorder %s18, 1
      %s217 = scalar_select %p216, %s18, 1
      %p218 = scmp.lt.s32.totalorder %s215, 2
      %s219 = scalar_select %p218, %s215, 2
      %s220 = smul.addr %s219, 2
      %s221 = smul.addr %s217, 6
      %s222 = sadd.s32 %s220, %s221
      %s223 = smul.addr %s222, 8
      %s224 = scalar_lea.vmem %s2, %s223
      %s225 = smul.u32 3, %s19
      %s226 = smul.u32 3, %s19
      %p227 = scmp.lt.s32.totalorder %s18, 1
      %s228 = scalar_select %p227, %s18, 1
      %p229 = scmp.lt.s32.totalorder %s226, 2
      %s230 = scalar_select %p229, %s226, 2
      %s231 = smul.addr %s230, 2
      %s232 = smul.addr %s228, 6
      %s233 = sadd.s32 %s231, %s232
      %s234 = smul.addr %s233, 8
      %s235 = scalar_lea.vmem %s3, %s234
      %s236 = smul.u32 3, %s19
      %v237 = vld [vmem:[%s224] sm:$0x3f]
      %v238 = vld [vmem:[%s224 + $0x8] sm:$0x3f]
      %v239 = vld [vmem:[%s224 + $0x10] sm:$0x3f]
      %v240 = vld [vmem:[%s224 + $0x18] sm:$0x3f]
      %v241 = vld [vmem:[%s224 + $0x20] sm:$0x3f]
      %v242 = vld [vmem:[%s224 + $0x28] sm:$0x3f]
      %v243 = vlaneseq
      %v244 = vshrl.u32 %v243, 7
      %vm245 = vcmp.ge.s32.totalorder %v244, 2
      %vm246 = vcmp.le.s32.totalorder %v244, 3
      %vm247 = vmand %vm245, %vm246
      %v248 = vsub.f32 0.0, %v237
      %v249 = vsub.f32 0.0, %v238
      %v250 = vsub.f32 0.0, %v239
      %v251 = vsub.f32 0.0, %v240
      %v252 = vsub.f32 0.0, %v241
      %v253 = vsub.f32 0.0, %v242
      %v254 = vsel %vm247, %v237, %v248
      %v255 = vsel %vm247, %v238, %v249
      %v256 = vsel %vm247, %v239, %v250
      %v257 = vsel %vm247, %v240, %v251
      %v258 = vsel %vm247, %v241, %v252
      %v259 = vsel %vm247, %v242, %v253
      %v260 = vmul.f32 %v254, 1.442695
      %v261 = vpow.pop %v260
      %v262 = vmul.f32 %v255, 1.442695
      %v263 = vpow.pop %v262
      %v264 = vmul.f32 %v256, 1.442695
      %v265 = vpow.pop %v264
      %v266 = vmul.f32 %v257, 1.442695
      %v267 = vpow.pop %v266
      %v268 = vmul.f32 %v258, 1.442695
      %v269 = vpow.pop %v268
      %v270 = vmul.f32 %v259, 1.442695
      %v271 = vpow.pop %v270
      %v272 = vadd.f32 %v261, 1.0
      %v273 = vadd.f32 %v263, 1.0
      %v274 = vadd.f32 %v265, 1.0
      %v275 = vadd.f32 %v267, 1.0
      %v276 = vadd.f32 %v269, 1.0
      %v277 = vadd.f32 %v271, 1.0
      %v278 = vrcp.pop %v272
      %v279 = vmul.f32 1.0, %v278
      %v280 = vrcp.pop %v273
      %v281 = vmul.f32 1.0, %v280
      %v282 = vrcp.pop %v274
      %v283 = vmul.f32 1.0, %v282
      %v284 = vrcp.pop %v275
      %v285 = vmul.f32 1.0, %v284
      %v286 = vrcp.pop %v276
      %v287 = vmul.f32 1.0, %v286
      %v288 = vrcp.pop %v277
      %v289 = vmul.f32 1.0, %v288
      %v290 = vsel %vm247, %v261, %v279
      %v291 = vsel %vm247, %v263, %v281
      %v292 = vsel %vm247, %v265, %v283
      %v293 = vsel %vm247, %v267, %v285
      %v294 = vsel %vm247, %v269, %v287
      %v295 = vsel %vm247, %v271, %v289
      %v296 = vld [vmem:[%s213] sm:$0x3f]
      %v297 = vld [vmem:[%s213 + $0x8] sm:$0x3f]
      %v298 = vld [vmem:[%s213 + $0x10] sm:$0x3f]
      %300 = vset.pattern.permute.xlu0 0
      %301 = vperm.xlu0 %300, %v296
      %v302 = vpop.permute.xlu0 %301
      %305 = vset.pattern.permute.xlu0 0
      %306 = vperm.xlu0 %305, %v297
      %v307 = vpop.permute.xlu0 %306
      %310 = vset.pattern.permute.xlu0 0
      %311 = vperm.xlu0 %310, %v298
      %v312 = vpop.permute.xlu0 %311
      %v314 = vmul.f32 %v290, %v302
      %v315 = vmul.f32 %v291, %v302
      %v316 = vmul.f32 %v292, %v307
      %v317 = vmul.f32 %v293, %v307
      %v318 = vmul.f32 %v294, %v312
      %v319 = vmul.f32 %v295, %v312
      %v320 = vld [vmem:[%s1] sm:$0x3f]
      %v321 = vld [vmem:[%s1 + $0x8] sm:$0x3f]
      %v322 = vadd.f32 %v314, %v320
      %v323 = vadd.f32 %v315, %v321
      %v324 = vadd.f32 %v316, %v320
      %v325 = vadd.f32 %v317, %v321
      %v326 = vadd.f32 %v318, %v320
      %v327 = vadd.f32 %v319, %v321
      %328 = vst [vmem:[%s235] sm:$0x3f] %v322
      %329 = vst [vmem:[%s235 + $0x8] sm:$0x3f] %v323
      %330 = vst [vmem:[%s235 + $0x10] sm:$0x3f] %v324
      %331 = vst [vmem:[%s235 + $0x18] sm:$0x3f] %v325
      %332 = vst [vmem:[%s235 + $0x20] sm:$0x3f] %v326
      %333 = vst [vmem:[%s235 + $0x28] sm:$0x3f] %v327
      %s334 = smul.u32 3, %s19
      %p335 = scmp.lt.s32.totalorder %s18, 1
      %s336 = scalar_select %p335, %s18, 1
      %p337 = scmp.lt.s32.totalorder %s334, 2
      %s338 = scalar_select %p337, %s334, 2
      %s339 = smul.addr %s338, 2
      %s340 = smul.addr %s336, 6
      %s341 = sadd.s32 %s339, %s340
      %s342 = smul.addr %s341, 8
      %s343 = scalar_lea.vmem %s3, %s342
      // Predicated region
      $region33: #{tpu_custom_call.1} parent=31 // pred_check
        %p344 = pneg %p121
      $region34: #{tpu_custom_call.1} parent=31 // pred_check_branch
        %346 = sbr.rel (%p344) target = $region36
      $region35: #{tpu_custom_call.1} parent=31 // pred_region
        %s347 = smul.u32 3, %s19
      $region36: #{tpu_custom_call.1} parent=31 // pred_fallthru
        _
    $region32: #{tpu_custom_call.1} parent=5 // pred_fallthru
      _
    %p348 = scmp.le.s32.totalorder 2, %s9
    // Predicated region
    $region37: #{tpu_custom_call.1} parent=5 // pred_check
      %p349 = pneg %p348
    $region38: #{tpu_custom_call.1} parent=5 // pred_check_branch
      %351 = sbr.rel (%p349) target = $region40
    $region39: #{tpu_custom_call.1} parent=5 // pred_region
      %s352 = ssub.s32 %s9, 2
      // Predicated region
      $region41: #{tpu_custom_call.1} parent=39 // pred_check
        %p353 = pneg %p127
      $region42: #{tpu_custom_call.1} parent=39 // pred_check_branch
        %355 = sbr.rel (%p353) target = $region44
      $region43: #{tpu_custom_call.1} parent=39 // pred_region
        %s356 = smul.u32 3, %s21
        %p357 = scmp.lt.s32.totalorder %s20, 1
        %s358 = scalar_select %p357, %s20, 1
        %p359 = scmp.lt.s32.totalorder %s356, 2
        %s360 = scalar_select %p359, %s356, 2
        %s361 = smul.addr %s360, 2
        %s362 = smul.addr %s358, 6
        %s363 = sadd.s32 %s361, %s362
        %s364 = smul.addr %s363, 8
        %s365 = scalar_lea.vmem %s3, %s364
      $region44: #{tpu_custom_call.1} parent=39 // pred_fallthru
        _
    $region40: #{tpu_custom_call.1} parent=5 // pred_fallthru
      _
  $region6: #{tpu_custom_call.1} parent=0 // loop_footer
    %s13 = sadd.s32 1, %s9
  $region7: #{tpu_custom_call.1} parent=0 // loop_footer_branch
    %8 = sbr.rel target = $region3
  $region8: #{tpu_custom_call.1} parent=0 // loop_exit
    _

</llo_original>
